<compile_context>
chip_gen: v7x
topology: tpu7x:2x2x1
jax: 0.10.0
libtpu: 0.0.40
codegen_flags: <defaults>
</compile_context>

<pallas_src>
import functools
import math

import jax
import jax.numpy as jnp
import numpy as np
from jax.experimental import pallas as pl
from jax.experimental.pallas import tpu as pltpu

# ---------------------------------------------------------------------------
# Model configuration (mirrors the PyTorch construction above).
# ---------------------------------------------------------------------------
INPUT_DIM = 16                     # prod(state_shape) = 4*4
OUTPUT_DIM = 4                     # prod(action_shape) * num_atoms
HIDDEN = (32, 32)
FOURIER_DIM = HIDDEN[0]            # 32
HALF_FD = FOURIER_DIM // 2         # 16
MLP_IN = INPUT_DIM + FOURIER_DIM   # 48 (concatenate_fourier=True)
SIGMA = 1.0
MAX_TB = 1024                      # lane-dense batch tile cap


# ---------------------------------------------------------------------------
# Fused kernel: one (feat, TB) batch tile per grid step.
# ---------------------------------------------------------------------------
def _fourier_mlp_kernel(obs_ref, bp_ref, w1o_ref, w1s_ref, w1c_ref, b1_ref,
                        w2_ref, b2_ref, w3_ref, b3_ref, out_ref):
    """obs_ref : (16, TB)  obs^T tile
       bp_ref  : (16, 16)  (2*pi*Bmat)^T
       w1o/w1s/w1c : (32, 16) column blocks of W1 for [obs | sin | cos]
       b1, b2  : (32, 1);  b3 : (4, 1)
       w2      : (32, 32); w3 : (4, 32)
       out_ref : (4, TB)   logits^T tile (lane-dense store)."""
    obs_t = obs_ref[...]                                                      # (16, TB)
    proj = jnp.dot(bp_ref[...], obs_t, preferred_element_type=jnp.float32)    # (16, TB)
    sin_p = jnp.sin(proj)
    cos_p = jnp.cos(proj)

    h1 = (jnp.dot(w1o_ref[...], obs_t, preferred_element_type=jnp.float32)
          + jnp.dot(w1s_ref[...], sin_p, preferred_element_type=jnp.float32)
          + jnp.dot(w1c_ref[...], cos_p, preferred_element_type=jnp.float32)
          + b1_ref[...])                                                      # (32, TB)
    h1 = jnp.maximum(h1, 0.0)

    h2 = jnp.dot(w2_ref[...], h1, preferred_element_type=jnp.float32) + b2_ref[...]
    h2 = jnp.maximum(h2, 0.0)                                                 # (32, TB)

    out = jnp.dot(w3_ref[...], h2, preferred_element_type=jnp.float32) + b3_ref[...]
    out_ref[...] = out.astype(out_ref.dtype)                                  # (4, TB)


# ---------------------------------------------------------------------------
# pallas_call wrapper (operates on the padded, transposed obs).
# ---------------------------------------------------------------------------
@functools.partial(jax.jit, static_argnames=("tb",))
def _pallas_forward(obs_t, params, *, tb):
    b_pad = obs_t.shape[1]
    grid = (b_pad // tb,)

    def w_spec(shape):  # weights/biases: full-array block, resident in VMEM
        nd = len(shape)
        return pl.BlockSpec(shape, lambda i, _nd=nd: (0,) * _nd)

    in_specs = [
        pl.BlockSpec((INPUT_DIM, tb), lambda i: (0, i)),   # obs^T batch tile
        w_spec((HALF_FD, INPUT_DIM)),                      # (2*pi*Bmat)^T
        w_spec((HIDDEN[0], INPUT_DIM)),                    # W1 obs block
        w_spec((HIDDEN[0], HALF_FD)),                      # W1 sin block
        w_spec((HIDDEN[0], HALF_FD)),                      # W1 cos block
        w_spec((HIDDEN[0], 1)),                            # b1
        w_spec((HIDDEN[1], HIDDEN[0])),                    # W2
        w_spec((HIDDEN[1], 1)),                            # b2
        w_spec((OUTPUT_DIM, HIDDEN[1])),                   # W3
        w_spec((OUTPUT_DIM, 1)),                           # b3
    ]
    out_spec = pl.BlockSpec((OUTPUT_DIM, tb), lambda i: (0, i))

    # Advisory cost model for XLA's scheduler around the custom call.
    mm_flops = 2 * b_pad * (HALF_FD * INPUT_DIM            # proj
                            + HIDDEN[0] * MLP_IN            # layer 1 (split blocks)
                            + HIDDEN[1] * HIDDEN[0]         # layer 2
                            + OUTPUT_DIM * HIDDEN[1])       # output layer
    ew_flops = b_pad * (3 * HIDDEN[0] + HIDDEN[1] + OUTPUT_DIM)   # bias adds / relu
    n_weight_elems = (HALF_FD * INPUT_DIM + HIDDEN[0] * MLP_IN + HIDDEN[0]
                      + HIDDEN[1] * HIDDEN[0] + HIDDEN[1]
                      + OUTPUT_DIM * HIDDEN[1] + OUTPUT_DIM)
    cost = pl.CostEstimate(
        flops=int(mm_flops + ew_flops),
        transcendentals=int(2 * HALF_FD * b_pad),           # sin + cos
        bytes_accessed=int(4 * (b_pad * (INPUT_DIM + OUTPUT_DIM) + n_weight_elems)),
    )

    return pl.pallas_call(
        _fourier_mlp_kernel,
        out_shape=jax.ShapeDtypeStruct((OUTPUT_DIM, b_pad), jnp.float32),
        grid=grid,
        in_specs=in_specs,
        out_specs=out_spec,
        compiler_params=pltpu.CompilerParams(
            dimension_semantics=("parallel",)),
        cost_estimate=cost,
    )(obs_t,
      params["bp_t"], params["w1_obs"], params["w1_sin"], params["w1_cos"],
      params["b1"], params["w2"], params["b2"], params["w3"], params["b3"])


def fourier_mlp_forward(kernel_params, obs, state=None):
    """Forward of My_MLP(learn_fourier=True). Returns (logits, state)."""
    B = obs.shape[0]
    obs_flat = jnp.asarray(obs, jnp.float32).reshape(B, -1)   # flatten(1) -> (B, 16)
    assert obs_flat.shape[1] == INPUT_DIM

    # Batch tile: lane-dense, at least 128, capped at MAX_TB for large batches.
    tb = min(MAX_TB, 128 * math.ceil(max(B, 1) / 128))
    b_pad = tb * math.ceil(B / tb)

    obs_t = obs_flat.T                                        # (16, B)
    if b_pad != B:
        obs_t = jnp.pad(obs_t, ((0, 0), (0, b_pad - B)))

    out_t = _pallas_forward(obs_t, kernel_params, tb=tb)      # (4, b_pad)
    logits = out_t[:, :B].T                                   # (B, 4)
    return logits, state


# ---------------------------------------------------------------------------
# Parameter construction + one-time kernel-layout transform.
# ---------------------------------------------------------------------------
def init_params(key):
    """Create torch-equivalent float32 parameters and pre-transform them once
    for the kernel: fold 2*pi into Bmat, transpose it, and split W1 into its
    [obs | sin | cos] column blocks (matching torch's concat order)."""
    ks = jax.random.split(key, 4)

    # FFTblock: B ~ Normal(0, sigma), shape (in_dim, fourier_dim // 2)
    bmat = SIGMA * jax.random.normal(ks[0], (INPUT_DIM, HALF_FD), jnp.float32)

    def linear(k, fan_in, fan_out):  # torch nn.Linear default init
        kw, kb = jax.random.split(k)
        bound = 1.0 / np.sqrt(fan_in)
        w = jax.random.uniform(kw, (fan_out, fan_in), jnp.float32, -bound, bound)
        b = jax.random.uniform(kb, (fan_out,), jnp.float32, -bound, bound)
        return w, b

    w1, b1 = linear(ks[1], MLP_IN, HIDDEN[0])       # (32, 48), (32,)
    w2, b2 = linear(ks[2], HIDDEN[0], HIDDEN[1])    # (32, 32), (32,)
    w3, b3 = linear(ks[3], HIDDEN[1], OUTPUT_DIM)   # (4, 32),  (4,)

    raw = dict(bmat=bmat, w1=w1, b1=b1, w2=w2, b2=b2, w3=w3, b3=b3)

    kernel_params = dict(
        bp_t=(2.0 * np.pi * bmat).T,                          # (16, 16)
        w1_obs=w1[:, :INPUT_DIM],                             # (32, 16) obs cols
        w1_sin=w1[:, INPUT_DIM:INPUT_DIM + HALF_FD],          # (32, 16) sin cols
        w1_cos=w1[:, INPUT_DIM + HALF_FD:],                   # (32, 16) cos cols
        b1=b1[:, None], w2=w2, b2=b2[:, None], w3=w3, b3=b3[:, None],
    )
    return raw, kernel_params


def reference_forward(raw, obs):
    """Pure-JAX reference matching the PyTorch forward (row-major, f32)."""
    B = obs.shape[0]
    x = jnp.asarray(obs, jnp.float32).reshape(B, -1)
    proj = 2.0 * np.pi * jnp.dot(x, raw["bmat"], precision="highest")
    ff = jnp.concatenate([jnp.sin(proj), jnp.cos(proj)], axis=-1)
    ff = jnp.concatenate([x, ff], axis=-1)
    h1 = jax.nn.relu(jnp.dot(ff, raw["w1"].T, precision="highest") + raw["b1"])
    h2 = jax.nn.relu(jnp.dot(h1, raw["w2"].T, precision="highest") + raw["b2"])
    return jnp.dot(h2, raw["w3"].T, precision="highest") + raw["b3"]


# TODO(synk): dueling / softmax / num_atoms>1 branches of My_MLP are disabled
# in this configuration and are not implemented in the kernel.

if __name__ == "__main__":
    key = jax.random.PRNGKey(0)
    param_key, obs_key, obs_key2 = jax.random.split(key, 3)
    raw_params, kernel_params = init_params(param_key)

    # Primary small test: batch=2, state_shape=(4,4).
    batch = 2
    obs = jax.random.normal(obs_key, (batch, 4, 4), jnp.float32)
    logits, state = fourier_mlp_forward(kernel_params, obs, state=None)
    logits = jax.block_until_ready(logits)
    ref = jax.block_until_ready(reference_forward(raw_params, obs))
    np.testing.assert_allclose(np.asarray(logits), np.asarray(ref),
                               rtol=2e-3, atol=2e-3)
    assert logits.shape == (batch, OUTPUT_DIM)
    assert state is None

    # Secondary test: batch not a multiple of 128 (exercises pad + slice path).
    batch2 = 130
    obs2 = jax.random.normal(obs_key2, (batch2, 4, 4), jnp.float32)
    logits2, _ = fourier_mlp_forward(kernel_params, obs2, state=None)
    logits2 = jax.block_until_ready(logits2)
    ref2 = jax.block_until_ready(reference_forward(raw_params, obs2))
    np.testing.assert_allclose(np.asarray(logits2), np.asarray(ref2),
                               rtol=2e-3, atol=2e-3)
    assert logits2.shape == (batch2, OUTPUT_DIM)

    print("KERNEL_OK")
</pallas_src>

<mosaic_0001>
module attributes {stable_mosaic.version = 11 : i64} {
  func.func @_fourier_mlp_kernel(%arg0: i32, %arg1: memref<16x128xf32, #tpu.memory_space<vmem>>, %arg2: memref<16x16xf32, #tpu.memory_space<vmem>>, %arg3: memref<32x16xf32, #tpu.memory_space<vmem>>, %arg4: memref<32x16xf32, #tpu.memory_space<vmem>>, %arg5: memref<32x16xf32, #tpu.memory_space<vmem>>, %arg6: memref<32x1xf32, #tpu.memory_space<vmem>>, %arg7: memref<32x32xf32, #tpu.memory_space<vmem>>, %arg8: memref<32x1xf32, #tpu.memory_space<vmem>>, %arg9: memref<4x32xf32, #tpu.memory_space<vmem>>, %arg10: memref<4x1xf32, #tpu.memory_space<vmem>>, %arg11: memref<4x128xf32, #tpu.memory_space<vmem>>) attributes {dimension_semantics = [#tpu.dimension_semantics<parallel>], iteration_bounds = array<i64: 1>, scalar_prefetch = 0 : i64, scratch_operands = 0 : i64, tpu.core_type = #tpu.core_type<tc>, window_params = [{transform_indices = @transform_0, window_bounds = array<i64: 16, 128>}, {pipeline_mode = #tpu.pipeline_mode<synchronous>, transform_indices = @transform_1, window_bounds = array<i64: 16, 16>}, {pipeline_mode = #tpu.pipeline_mode<synchronous>, transform_indices = @transform_2, window_bounds = array<i64: 32, 16>}, {pipeline_mode = #tpu.pipeline_mode<synchronous>, transform_indices = @transform_3, window_bounds = array<i64: 32, 16>}, {pipeline_mode = #tpu.pipeline_mode<synchronous>, transform_indices = @transform_4, window_bounds = array<i64: 32, 16>}, {pipeline_mode = #tpu.pipeline_mode<synchronous>, transform_indices = @transform_5, window_bounds = array<i64: 32, 1>}, {pipeline_mode = #tpu.pipeline_mode<synchronous>, transform_indices = @transform_6, window_bounds = array<i64: 32, 32>}, {pipeline_mode = #tpu.pipeline_mode<synchronous>, transform_indices = @transform_7, window_bounds = array<i64: 32, 1>}, {pipeline_mode = #tpu.pipeline_mode<synchronous>, transform_indices = @transform_8, window_bounds = array<i64: 4, 32>}, {pipeline_mode = #tpu.pipeline_mode<synchronous>, transform_indices = @transform_9, window_bounds = array<i64: 4, 1>}, {transform_indices = @transform_10, window_bounds = array<i64: 4, 128>}]} {
    %c0 = arith.constant 0 : index
    %c0_0 = arith.constant 0 : index
    %0 = vector.load %arg1[%c0, %c0_0] : memref<16x128xf32, #tpu.memory_space<vmem>>, vector<16x128xf32>
    %c0_1 = arith.constant 0 : index
    %c0_2 = arith.constant 0 : index
    %1 = vector.load %arg2[%c0_1, %c0_2] : memref<16x16xf32, #tpu.memory_space<vmem>>, vector<16x16xf32>
    %cst = arith.constant dense<0.000000e+00> : vector<16x128xf32>
    %2 = tpu.matmul %1, %0, %cst {dimension_numbers = #tpu.dot_dimension_numbers<[1], [0], [0], [1], [0, 0, 1, 1], [], []>} : vector<16x16xf32>, vector<16x128xf32>, vector<16x128xf32> -> vector<16x128xf32>
    %3 = math.sin %2 : vector<16x128xf32>
    %4 = math.cos %2 : vector<16x128xf32>
    %c0_3 = arith.constant 0 : index
    %c0_4 = arith.constant 0 : index
    %5 = vector.load %arg3[%c0_3, %c0_4] : memref<32x16xf32, #tpu.memory_space<vmem>>, vector<32x16xf32>
    %cst_5 = arith.constant dense<0.000000e+00> : vector<32x128xf32>
    %6 = tpu.matmul %5, %0, %cst_5 {dimension_numbers = #tpu.dot_dimension_numbers<[1], [0], [0], [1], [0, 0, 1, 1], [], []>} : vector<32x16xf32>, vector<16x128xf32>, vector<32x128xf32> -> vector<32x128xf32>
    %c0_6 = arith.constant 0 : index
    %c0_7 = arith.constant 0 : index
    %7 = vector.load %arg4[%c0_6, %c0_7] : memref<32x16xf32, #tpu.memory_space<vmem>>, vector<32x16xf32>
    %cst_8 = arith.constant dense<0.000000e+00> : vector<32x128xf32>
    %8 = tpu.matmul %7, %3, %cst_8 {dimension_numbers = #tpu.dot_dimension_numbers<[1], [0], [0], [1], [0, 0, 1, 1], [], []>} : vector<32x16xf32>, vector<16x128xf32>, vector<32x128xf32> -> vector<32x128xf32>
    %9 = arith.addf %6, %8 : vector<32x128xf32>
    %c0_9 = arith.constant 0 : index
    %c0_10 = arith.constant 0 : index
    %10 = vector.load %arg5[%c0_9, %c0_10] : memref<32x16xf32, #tpu.memory_space<vmem>>, vector<32x16xf32>
    %cst_11 = arith.constant dense<0.000000e+00> : vector<32x128xf32>
    %11 = tpu.matmul %10, %4, %cst_11 {dimension_numbers = #tpu.dot_dimension_numbers<[1], [0], [0], [1], [0, 0, 1, 1], [], []>} : vector<32x16xf32>, vector<16x128xf32>, vector<32x128xf32> -> vector<32x128xf32>
    %12 = arith.addf %9, %11 : vector<32x128xf32>
    %c0_12 = arith.constant 0 : index
    %c0_13 = arith.constant 0 : index
    %13 = vector.load %arg6[%c0_12, %c0_13] : memref<32x1xf32, #tpu.memory_space<vmem>>, vector<32x1xf32>
    %14 = vector.broadcast %13 : vector<32x1xf32> to vector<32x128xf32>
    %15 = arith.addf %12, %14 : vector<32x128xf32>
    %cst_14 = arith.constant 0.000000e+00 : f32
    %16 = vector.broadcast %cst_14 : f32 to vector<32x128xf32>
    %17 = arith.maximumf %15, %16 : vector<32x128xf32>
    %c0_15 = arith.constant 0 : index
    %c0_16 = arith.constant 0 : index
    %18 = vector.load %arg7[%c0_15, %c0_16] : memref<32x32xf32, #tpu.memory_space<vmem>>, vector<32x32xf32>
    %cst_17 = arith.constant dense<0.000000e+00> : vector<32x128xf32>
    %19 = tpu.matmul %18, %17, %cst_17 {dimension_numbers = #tpu.dot_dimension_numbers<[1], [0], [0], [1], [0, 0, 1, 1], [], []>} : vector<32x32xf32>, vector<32x128xf32>, vector<32x128xf32> -> vector<32x128xf32>
    %c0_18 = arith.constant 0 : index
    %c0_19 = arith.constant 0 : index
    %20 = vector.load %arg8[%c0_18, %c0_19] : memref<32x1xf32, #tpu.memory_space<vmem>>, vector<32x1xf32>
    %21 = vector.broadcast %20 : vector<32x1xf32> to vector<32x128xf32>
    %22 = arith.addf %19, %21 : vector<32x128xf32>
    %cst_20 = arith.constant 0.000000e+00 : f32
    %23 = vector.broadcast %cst_20 : f32 to vector<32x128xf32>
    %24 = arith.maximumf %22, %23 : vector<32x128xf32>
    %c0_21 = arith.constant 0 : index
    %c0_22 = arith.constant 0 : index
    %25 = vector.load %arg9[%c0_21, %c0_22] : memref<4x32xf32, #tpu.memory_space<vmem>>, vector<4x32xf32>
    %cst_23 = arith.constant dense<0.000000e+00> : vector<4x128xf32>
    %26 = tpu.matmul %25, %24, %cst_23 {dimension_numbers = #tpu.dot_dimension_numbers<[1], [0], [0], [1], [0, 0, 1, 1], [], []>} : vector<4x32xf32>, vector<32x128xf32>, vector<4x128xf32> -> vector<4x128xf32>
    %c0_24 = arith.constant 0 : index
    %c0_25 = arith.constant 0 : index
    %27 = vector.load %arg10[%c0_24, %c0_25] : memref<4x1xf32, #tpu.memory_space<vmem>>, vector<4x1xf32>
    %28 = vector.broadcast %27 : vector<4x1xf32> to vector<4x128xf32>
    %29 = arith.addf %26, %28 : vector<4x128xf32>
    %c0_26 = arith.constant 0 : index
    %c0_27 = arith.constant 0 : index
    %30 = vector.load %arg11[%c0_26, %c0_27] : memref<4x128xf32, #tpu.memory_space<vmem>>, vector<4x128xf32>
    tpu.vector_store %arg11[%c0_26, %c0_27], %29 {strides = array<i32>} : memref<4x128xf32, #tpu.memory_space<vmem>>, vector<4x128xf32>,
    return
  }
  func.func @transform_0(%arg0: i32) -> (i32, i32) {
    %c0_i32 = arith.constant 0 : i32
    %c0_i32_0 = arith.constant 0 : i32
    return %c0_i32, %arg0 : i32, i32
  }
  func.func @transform_1(%arg0: i32) -> (i32, i32) {
    %c0_i32 = arith.constant 0 : i32
    %c0_i32_0 = arith.constant 0 : i32
    %c0_i32_1 = arith.constant 0 : i32
    return %c0_i32, %c0_i32_0 : i32, i32
  }
  func.func @transform_2(%arg0: i32) -> (i32, i32) {
    %c0_i32 = arith.constant 0 : i32
    %c0_i32_0 = arith.constant 0 : i32
    %c0_i32_1 = arith.constant 0 : i32
    return %c0_i32, %c0_i32_0 : i32, i32
  }
  func.func @transform_3(%arg0: i32) -> (i32, i32) {
    %c0_i32 = arith.constant 0 : i32
    %c0_i32_0 = arith.constant 0 : i32
    %c0_i32_1 = arith.constant 0 : i32
    return %c0_i32, %c0_i32_0 : i32, i32
  }
  func.func @transform_4(%arg0: i32) -> (i32, i32) {
    %c0_i32 = arith.constant 0 : i32
    %c0_i32_0 = arith.constant 0 : i32
    %c0_i32_1 = arith.constant 0 : i32
    return %c0_i32, %c0_i32_0 : i32, i32
  }
  func.func @transform_5(%arg0: i32) -> (i32, i32) {
    %c0_i32 = arith.constant 0 : i32
    %c0_i32_0 = arith.constant 0 : i32
    %c0_i32_1 = arith.constant 0 : i32
    return %c0_i32, %c0_i32_0 : i32, i32
  }
  func.func @transform_6(%arg0: i32) -> (i32, i32) {
    %c0_i32 = arith.constant 0 : i32
    %c0_i32_0 = arith.constant 0 : i32
    %c0_i32_1 = arith.constant 0 : i32
    return %c0_i32, %c0_i32_0 : i32, i32
  }
  func.func @transform_7(%arg0: i32) -> (i32, i32) {
    %c0_i32 = arith.constant 0 : i32
    %c0_i32_0 = arith.constant 0 : i32
    %c0_i32_1 = arith.constant 0 : i32
    return %c0_i32, %c0_i32_0 : i32, i32
  }
  func.func @transform_8(%arg0: i32) -> (i32, i32) {
    %c0_i32 = arith.constant 0 : i32
    %c0_i32_0 = arith.constant 0 : i32
    %c0_i32_1 = arith.constant 0 : i32
    return %c0_i32, %c0_i32_0 : i32, i32
  }
  func.func @transform_9(%arg0: i32) -> (i32, i32) {
    %c0_i32 = arith.constant 0 : i32
    %c0_i32_0 = arith.constant 0 : i32
    %c0_i32_1 = arith.constant 0 : i32
    return %c0_i32, %c0_i32_0 : i32, i32
  }
  func.func @transform_10(%arg0: i32) -> (i32, i32) {
    %c0_i32 = arith.constant 0 : i32
    %c0_i32_0 = arith.constant 0 : i32
    return %c0_i32, %arg0 : i32, i32
  }
}

</mosaic_0001>

<llo_original>
// kernel: _pallas_forward.1
$region0: #{_pallas_forward.1}
  #allocation0 [shape = 'u32[]', space=smem, size = 0x4, offset = 0x4, fixed_abs, tag = 'smem constant byte address 0x4 - core index']
  #allocation1 [shape = 'u32[144,128]{1,0:T(1,128)}', space=vmem, size = 0x12000, scoped, tag = 'internal scratch']
  %s0 = inlined_call_operand.vmem [shape: f32[16,128], index: 0, kind: input, shape index: {}]
  %s1 = inlined_call_operand.vmem [shape: f32[16,16], index: 1, kind: input, shape index: {}]
  %s2 = inlined_call_operand.vmem [shape: f32[32,16], index: 2, kind: input, shape index: {}]
  %s3 = inlined_call_operand.vmem [shape: f32[32,16], index: 3, kind: input, shape index: {}]
  %s4 = inlined_call_operand.vmem [shape: f32[32,16], index: 4, kind: input, shape index: {}]
  %s5 = inlined_call_operand.vmem [shape: f32[32,1], index: 5, kind: input, shape index: {}]
  %s6 = inlined_call_operand.vmem [shape: f32[32,32], index: 6, kind: input, shape index: {}]
  %s7 = inlined_call_operand.vmem [shape: f32[32,1], index: 7, kind: input, shape index: {}]
  %s8 = inlined_call_operand.vmem [shape: f32[4,32], index: 8, kind: input, shape index: {}]
  %s9 = inlined_call_operand.vmem [shape: f32[4,1], index: 9, kind: input, shape index: {}]
  %s10 = inlined_call_operand.hbm [shape: f32[4,128], index: 10, kind: output, shape index: {}]
  %s11 = sld [smem:[#allocation0]]
  $region50: #{_pallas_forward.1} parent=0
    _
  %s13 = ssub.s32 1, %s11
  %s14 = scalar_select 0, %s13, %s11
  $region1: #{_pallas_forward.1} parent=0
    #allocation2 [shape = 'u8[2048]{0}', space=vmem, size = 0x800, scoped, tag = 'output window, operand 0, single buffered']
    #allocation3 [shape = 's32[1]{0}', space=sflag, size = 0x4, scoped, tag = 'scoped memory for _pallas_forward.1']
    %15 = vsyncpa [#allocation3], 0
    // Predicated region
    $region2: #{_pallas_forward.1} parent=1 // pred_check
      _
    $region3: #{_pallas_forward.1} parent=1 // pred_check_branch
      %17 = sbr.rel (0) target = $region5
    $region4: #{_pallas_forward.1} parent=1 // pred_region
      _
    $region5: #{_pallas_forward.1} parent=1 // pred_fallthru
      _
    // Predicated region
    $region6: #{_pallas_forward.1} parent=1 // pred_check
      _
    $region7: #{_pallas_forward.1} parent=1 // pred_check_branch
      %19 = sbr.rel (0) target = $region9
    $region8: #{_pallas_forward.1} parent=1 // pred_region
      _
    $region9: #{_pallas_forward.1} parent=1 // pred_fallthru
      _
    // Predicated region
    $region10: #{_pallas_forward.1} parent=1 // pred_check
      _
    $region11: #{_pallas_forward.1} parent=1 // pred_check_branch
      %21 = sbr.rel (0) target = $region13
    $region12: #{_pallas_forward.1} parent=1 // pred_region
      _
    $region13: #{_pallas_forward.1} parent=1 // pred_fallthru
      _
    // Predicated region
    $region14: #{_pallas_forward.1} parent=1 // pred_check
      _
    $region15: #{_pallas_forward.1} parent=1 // pred_check_branch
      %23 = sbr.rel (0) target = $region17
    $region16: #{_pallas_forward.1} parent=1 // pred_region
      _
    $region17: #{_pallas_forward.1} parent=1 // pred_fallthru
      _
    // Predicated region
    $region18: #{_pallas_forward.1} parent=1 // pred_check
      _
    $region19: #{_pallas_forward.1} parent=1 // pred_check_branch
      %25 = sbr.rel (0) target = $region21
    $region20: #{_pallas_forward.1} parent=1 // pred_region
      _
    $region21: #{_pallas_forward.1} parent=1 // pred_fallthru
      _
    // Predicated region
    $region22: #{_pallas_forward.1} parent=1 // pred_check
      _
    $region23: #{_pallas_forward.1} parent=1 // pred_check_branch
      %27 = sbr.rel (0) target = $region25
    $region24: #{_pallas_forward.1} parent=1 // pred_region
      _
    $region25: #{_pallas_forward.1} parent=1 // pred_fallthru
      _
    // Predicated region
    $region26: #{_pallas_forward.1} parent=1 // pred_check
      _
    $region27: #{_pallas_forward.1} parent=1 // pred_check_branch
      %29 = sbr.rel (0) target = $region29
    $region28: #{_pallas_forward.1} parent=1 // pred_region
      _
    $region29: #{_pallas_forward.1} parent=1 // pred_fallthru
      _
    // Predicated region
    $region30: #{_pallas_forward.1} parent=1 // pred_check
      _
    $region31: #{_pallas_forward.1} parent=1 // pred_check_branch
      %31 = sbr.rel (0) target = $region33
    $region32: #{_pallas_forward.1} parent=1 // pred_region
      _
    $region33: #{_pallas_forward.1} parent=1 // pred_fallthru
      _
    // Predicated region
    $region34: #{_pallas_forward.1} parent=1 // pred_check
      _
    $region35: #{_pallas_forward.1} parent=1 // pred_check_branch
      %33 = sbr.rel (0) target = $region37
    $region36: #{_pallas_forward.1} parent=1 // pred_region
      _
    $region37: #{_pallas_forward.1} parent=1 // pred_fallthru
      _
    // Predicated region
    $region38: #{_pallas_forward.1} parent=1 // pred_check
      _
    $region39: #{_pallas_forward.1} parent=1 // pred_check_branch
      %35 = sbr.rel (0) target = $region41
    $region40: #{_pallas_forward.1} parent=1 // pred_region
      _
    $region41: #{_pallas_forward.1} parent=1 // pred_fallthru
      _
    %v36 = vld [vmem:[%s0] sm:$0xff]
    %v37 = vld [vmem:[%s0 + $0x8] sm:$0xff]
    %v38 = vld [vmem:[%s1] sm:$0xff]
    %v39 = vld [vmem:[%s1 + $0x8] sm:$0xff]
    %vm40 = vcmask 130048
    %v42 = vsel %vm40, %v38, 0
    %v45 = vsel %vm40, %v39, 0
    %47 = vmatprep.subr.mxu0 0.0
    %48 = vmatpush1.msra.mxu0 %v36
    %49 = vmatprep.subr.mxu0 0.0
    %50 = vmatpush1.msra.mxu0 %v37
    %51 = vmatprep.subr.mxu0 0.0
    %52 = vmatpush1.msra.mxu0 0.0
    %53 = vmatprep.subr.mxu0 0.0
    %54 = vmatpush1.msra.mxu0 0.0
    %55 = vmatprep.subr.mxu0 0.0
    %56 = vmatpush1.msra.mxu0 0.0
    %57 = vmatprep.subr.mxu0 0.0
    %58 = vmatpush1.msra.mxu0 0.0
    %59 = vmatprep.subr.mxu0 0.0
    %60 = vmatpush1.msra.mxu0 0.0
    %61 = vmatprep.subr.mxu0 0.0
    %62 = vmatpush1.msra.mxu0 0.0
    %63 = vmatprep.subr.mxu0 0.0
    %64 = vmatpush1.msra.mxu0 0.0
    %65 = vmatprep.subr.mxu0 0.0
    %66 = vmatpush1.msra.mxu0 0.0
    %67 = vmatprep.subr.mxu0 0.0
    %68 = vmatpush1.msra.mxu0 0.0
    %69 = vmatprep.subr.mxu0 0.0
    %70 = vmatpush1.msra.mxu0 0.0
    %71 = vmatprep.subr.mxu0 0.0
    %72 = vmatpush1.msra.mxu0 0.0
    %73 = vmatprep.subr.mxu0 0.0
    %74 = vmatpush1.msra.mxu0 0.0
    %75 = vmatprep.subr.mxu0 0.0
    %76 = vmatpush1.msra.mxu0 0.0
    %77 = vmatprep.subr.mxu0 0.0
    %78 = vmatpush1.msra.mxu0 0.0
    %79 = vmatprep.subr.mxu0 0.0
    %80 = vmatpush1.msra.mxu0 0.0
    %81 = vmatprep.subr.mxu0 0.0
    %82 = vmatpush1.msra.mxu0 0.0
    %83 = vmatprep.subr.mxu0 0.0
    %84 = vmatpush1.msra.mxu0 0.0
    %85 = vmatprep.subr.mxu0 0.0
    %86 = vmatpush1.msra.mxu0 0.0
    %87 = vmatprep.subr.mxu0 0.0
    %88 = vmatpush1.msra.mxu0 0.0
    %89 = vmatprep.subr.mxu0 0.0
    %90 = vmatpush1.msra.mxu0 0.0
    %91 = vmatprep.subr.mxu0 0.0
    %92 = vmatpush1.msra.mxu0 0.0
    %93 = vmatprep.subr.mxu0 0.0
    %94 = vmatpush1.msra.mxu0 0.0
    %95 = vmatprep.subr.mxu0 0.0
    %96 = vmatpush1.msra.mxu0 0.0
    %97 = vmatprep.subr.mxu0 0.0
    %98 = vmatpush1.msra.mxu0 0.0
    %99 = vmatprep.subr.mxu0 0.0
    %100 = vmatpush1.msra.mxu0 0.0
    %101 = vmatprep.subr.mxu0 0.0
    %102 = vmatpush1.msra.mxu0 0.0
    %103 = vmatprep.subr.mxu0 0.0
    %104 = vmatpush1.msra.mxu0 0.0
    %105 = vmatprep.subr.mxu0 0.0
    %106 = vmatpush1.msra.mxu0 0.0
    %107 = vmatprep.subr.mxu0 0.0
    %108 = vmatpush1.msra.mxu0 0.0
    %109 = vmatprep.subr.mxu0 0.0
    %110 = vmatpush1.msra.mxu0 0.0
    %111 = vmatprep.mubr.f32.mxu0 0.0
    %112 = vmatmul.mubr.f32.gmra.mrb[0].mxu0 %v42
    %v113 = vpop.f32.mrb[0].mxu0
    %v114 = vadd.f32 0.0, %v113
    %v115 = vpop.f32.mrb[0].mxu0
    %116 = vmatprep.mubr.f32.mxu0 0.0
    %117 = vmatmul.mubr.f32.gmra.mrb[0].mxu0 %v45
    %v118 = vpop.f32.mrb[0].mxu0
    %v119 = vadd.f32 0.0, %v118
    %v120 = vpop.f32.mrb[0].mxu0
    %121 = vdwg.mxu0
    %v122 = vand.u32 2147483647, %v114
    %vm123 = vcmp.le.f32.partialorder %v122, 0.7853982
    %vm124 = vcmp.lt.s32.totalorder %v114, 0
    %v125 = vand.u32 %v114, 2139095040
    %v126 = vshrl.u32 %v125, 23
    %v127 = vsub.s32 %v126, 127
    %v128 = vand.u32 2147483647, %v114
    %v129 = vand.u32 %v128, 8388607
    %v130 = vor.u32 %v129, 8388608
    %v131 = vsub.s32 0, %v130
    %v132 = vadd.s32 %v127, 1
    %vm133 = vcmp.gt.s32.totalorder %v132, 0
    %v134 = vsel %vm133, %v132, 0
    %v135 = vshrl.u32 %v134, 5
    %v136 = vand.u32 %v134, 31
    %v137 = vsub.s32 32, %v136
    %v138 = vshrl.u32 683565275, %v137
    %v139 = vshll.u32 683565275, %v136
    %v140 = vshrl.u32 2475754826, %v137
    %v141 = vor.u32 %v139, %v140
    %v142 = vshll.u32 2475754826, %v136
    %v143 = vshrl.u32 2131351028, %v137
    %v144 = vor.u32 %v142, %v143
    %v145 = vshll.u32 2131351028, %v136
    %v146 = vshrl.u32 2102212464, %v137
    %v147 = vor.u32 %v145, %v146
    %v148 = vshll.u32 2102212464, %v136
    %v149 = vshrl.u32 920167782, %v137
    %v150 = vor.u32 %v148, %v149
    %v151 = vshll.u32 920167782, %v136
    %v152 = vshrl.u32 1326507024, %v137
    %v153 = vor.u32 %v151, %v152
    %vm154 = vcmp.lt.s32.totalorder %v135, 1
    %vm155 = vcmp.lt.s32.totalorder %v135, 2
    %vm156 = vcmp.lt.s32.totalorder %v135, 3
    %vm157 = vcmp.lt.s32.totalorder %v135, 4
    %v158 = vsel %vm154, %v138, %v141
    %v159 = vsel %vm157, %v147, 2102212464
    %v160 = vsel %vm156, %v144, %v159
    %v161 = vsel %vm155, %v158, %v160
    %v162 = vsel %vm154, %v141, %v144
    %v163 = vsel %vm157, %v150, 920167782
    %v164 = vsel %vm156, %v147, %v163
    %v165 = vsel %vm155, %v162, %v164
    %v166 = vsel %vm154, %v144, %v147
    %v167 = vsel %vm157, %v153, 1326507024
    %v168 = vsel %vm156, %v150, %v167
    %v169 = vsel %vm155, %v166, %v168
    %v170 = vshll.u32 %v130, 8
    %v171 = vmul.u32.u64.compose %v170, %v169
    %v172 = vextract.low.u32 %v171
    %v173 = vextract.high.u32 %v171
    %v174 = vmul.u32.u64.compose %v170, %v165
    %v175 = vextract.low.u32 %v174
    %v176 = vextract.high.u32 %v174
    %v177 = vmul.u32 %v170, %v161
    %v178 = vadd.s32 %v173, %v175
    %vm179 = vc.u32 %v173, %v175
    %v180 = vadd.s32 %v176, 1
    %v181 = vsel %vm179, %v180, %v176
    %v182 = vadd.s32 %v177, %v181
    %v183 = vadd.s32 %v182, 536870912
    %v184 = vshrl.u32 %v183, 30
    %v185 = vshll.u32 %v184, 30
    %v186 = vsub.s32 %v182, %v185
    %vm187 = vcmp.lt.s32.totalorder %v186, 0
    %v188 = vsub.s32 0, %v186
    %v189 = vsel %vm187, %v188, %v186
    %v190 = vclz %v189
    %v191 = vsub.s32 %v190, 2
    %vm192 = vcmp.gt.s32.totalorder 0, %v191
    %v193 = vsel %vm192, 0, %v191
    %v194 = vsub.s32 32, %v193
    %v195 = vshll.u32 %v186, %v193
    %v196 = vshrl.u32 %v178, %v194
    %v197 = vor.u32 %v195, %v196
    %v198 = vsub.s32 4294967266, %v193
    %v199 = vadd.s32 %v198, 127
    %v200 = vshll.u32 %v199, 23
    %v201 = vor.u32 4788187, %v200
    %v202 = vand.u32 2147483647, %v201
    %v204 = vcvt.s32.f32 %v197
    %v205 = vmul.f32 %v204, %v202
    %v206 = vxor.u32 %v205, 2147483648
    %v207 = vsel %vm124, %v206, %v205
    %v208 = vsub.s32 4, %v184
    %v209 = vsel %vm124, %v208, %v184
    %v210 = vsel %vm123, %v114, %v207
    %v211 = vsel %vm123, 0, %v209
    %v212 = vcosq.f32.pop %v210
    %v213 = vsinq.f32.pop %v210
    %vm214 = vweird.f32 %v114
    %v215 = vadd.s32 %v211, 3
    %v216 = vand.u32 %v215, 3
    %vm217 = vcmp.lt.s32.totalorder %v216, 2
    %vm218 = vcmp.eq.s32.totalorder %v216, 0
    %v219 = vxor.u32 %v213, 2147483648
    %v220 = vsel %vm218, %v212, %v219
    %vm221 = vcmp.eq.s32.totalorder %v216, 2
    %v222 = vxor.u32 %v212, 2147483648
    %v223 = vsel %vm221, %v222, %v213
    %v224 = vsel %vm217, %v220, %v223
    %v225 = vsel %vm214, nan, %v224
    %v226 = vand.u32 2147483647, %v119
    %vm227 = vcmp.le.f32.partialorder %v226, 0.7853982
    %vm228 = vcmp.lt.s32.totalorder %v119, 0
    %v229 = vand.u32 %v119, 2139095040
    %v230 = vshrl.u32 %v229, 23
    %v231 = vsub.s32 %v230, 127
    %v232 = vand.u32 2147483647, %v119
    %v233 = vand.u32 %v232, 8388607
    %v234 = vor.u32 %v233, 8388608
    %v235 = vsub.s32 0, %v234
    %v236 = vadd.s32 %v231, 1
    %vm237 = vcmp.gt.s32.totalorder %v236, 0
    %v238 = vsel %vm237, %v236, 0
    %v239 = vshrl.u32 %v238, 5
    %v240 = vand.u32 %v238, 31
    %v241 = vsub.s32 32, %v240
    %v242 = vshrl.u32 683565275, %v241
    %v243 = vshll.u32 683565275, %v240
    %v244 = vshrl.u32 2475754826, %v241
    %v245 = vor.u32 %v243, %v244
    %v246 = vshll.u32 2475754826, %v240
    %v247 = vshrl.u32 2131351028, %v241
    %v248 = vor.u32 %v246, %v247
    %v249 = vshll.u32 2131351028, %v240
    %v250 = vshrl.u32 2102212464, %v241
    %v251 = vor.u32 %v249, %v250
    %v252 = vshll.u32 2102212464, %v240
    %v253 = vshrl.u32 920167782, %v241
    %v254 = vor.u32 %v252, %v253
    %v255 = vshll.u32 920167782, %v240
    %v256 = vshrl.u32 1326507024, %v241
    %v257 = vor.u32 %v255, %v256
    %vm258 = vcmp.lt.s32.totalorder %v239, 1
    %vm259 = vcmp.lt.s32.totalorder %v239, 2
    %vm260 = vcmp.lt.s32.totalorder %v239, 3
    %vm261 = vcmp.lt.s32.totalorder %v239, 4
    %v262 = vsel %vm258, %v242, %v245
    %v263 = vsel %vm261, %v251, 2102212464
    %v264 = vsel %vm260, %v248, %v263
    %v265 = vsel %vm259, %v262, %v264
    %v266 = vsel %vm258, %v245, %v248
    %v267 = vsel %vm261, %v254, 920167782
    %v268 = vsel %vm260, %v251, %v267
    %v269 = vsel %vm259, %v266, %v268
    %v270 = vsel %vm258, %v248, %v251
    %v271 = vsel %vm261, %v257, 1326507024
    %v272 = vsel %vm260, %v254, %v271
    %v273 = vsel %vm259, %v270, %v272
    %v274 = vshll.u32 %v234, 8
    %v275 = vmul.u32.u64.compose %v274, %v273
    %v276 = vextract.low.u32 %v275
    %v277 = vextract.high.u32 %v275
    %v278 = vmul.u32.u64.compose %v274, %v269
    %v279 = vextract.low.u32 %v278
    %v280 = vextract.high.u32 %v278
    %v281 = vmul.u32 %v274, %v265
    %v282 = vadd.s32 %v277, %v279
    %vm283 = vc.u32 %v277, %v279
    %v284 = vadd.s32 %v280, 1
    %v285 = vsel %vm283, %v284, %v280
    %v286 = vadd.s32 %v281, %v285
    %v287 = vadd.s32 %v286, 536870912
    %v288 = vshrl.u32 %v287, 30
    %v289 = vshll.u32 %v288, 30
    %v290 = vsub.s32 %v286, %v289
    %vm291 = vcmp.lt.s32.totalorder %v290, 0
    %v292 = vsub.s32 0, %v290
    %v293 = vsel %vm291, %v292, %v290
    %v294 = vclz %v293
    %v295 = vsub.s32 %v294, 2
    %vm296 = vcmp.gt.s32.totalorder 0, %v295
    %v297 = vsel %vm296, 0, %v295
    %v298 = vsub.s32 32, %v297
    %v299 = vshll.u32 %v290, %v297
    %v300 = vshrl.u32 %v282, %v298
    %v301 = vor.u32 %v299, %v300
    %v302 = vsub.s32 4294967266, %v297
    %v303 = vadd.s32 %v302, 127
    %v304 = vshll.u32 %v303, 23
    %v305 = vor.u32 4788187, %v304
    %v306 = vand.u32 2147483647, %v305
    %v308 = vcvt.s32.f32 %v301
    %v309 = vmul.f32 %v308, %v306
    %v310 = vxor.u32 %v309, 2147483648
    %v311 = vsel %vm228, %v310, %v309
    %v312 = vsub.s32 4, %v288
    %v313 = vsel %vm228, %v312, %v288
    %v314 = vsel %vm227, %v119, %v311
    %v315 = vsel %vm227, 0, %v313
    %v316 = vcosq.f32.pop %v314
    %v317 = vsinq.f32.pop %v314
    %vm318 = vweird.f32 %v119
    %v319 = vadd.s32 %v315, 3
    %v320 = vand.u32 %v319, 3
    %vm321 = vcmp.lt.s32.totalorder %v320, 2
    %vm322 = vcmp.eq.s32.totalorder %v320, 0
    %v323 = vxor.u32 %v317, 2147483648
    %v324 = vsel %vm322, %v316, %v323
    %vm325 = vcmp.eq.s32.totalorder %v320, 2
    %v326 = vxor.u32 %v316, 2147483648
    %v327 = vsel %vm325, %v326, %v317
    %v328 = vsel %vm321, %v324, %v327
    %v329 = vsel %vm318, nan, %v328
    %v330 = vand.u32 2147483647, %v114
    %vm331 = vcmp.le.f32.partialorder %v330, 0.7853982
    %vm332 = vcmp.lt.s32.totalorder %v114, 0
    %v333 = vand.u32 %v114, 2139095040
    %v334 = vshrl.u32 %v333, 23
    %v335 = vsub.s32 %v334, 127
    %v336 = vand.u32 2147483647, %v114
    %v337 = vand.u32 %v336, 8388607
    %v338 = vor.u32 %v337, 8388608
    %v339 = vsub.s32 0, %v338
    %v340 = vadd.s32 %v335, 1
    %vm341 = vcmp.gt.s32.totalorder %v340, 0
    %v342 = vsel %vm341, %v340, 0
    %v343 = vshrl.u32 %v342, 5
    %v344 = vand.u32 %v342, 31
    %v345 = vsub.s32 32, %v344
    %v346 = vshrl.u32 683565275, %v345
    %v347 = vshll.u32 683565275, %v344
    %v348 = vshrl.u32 2475754826, %v345
    %v349 = vor.u32 %v347, %v348
    %v350 = vshll.u32 2475754826, %v344
    %v351 = vshrl.u32 2131351028, %v345
    %v352 = vor.u32 %v350, %v351
    %v353 = vshll.u32 2131351028, %v344
    %v354 = vshrl.u32 2102212464, %v345
    %v355 = vor.u32 %v353, %v354
    %v356 = vshll.u32 2102212464, %v344
    %v357 = vshrl.u32 920167782, %v345
    %v358 = vor.u32 %v356, %v357
    %v359 = vshll.u32 920167782, %v344
    %v360 = vshrl.u32 1326507024, %v345
    %v361 = vor.u32 %v359, %v360
    %vm362 = vcmp.lt.s32.totalorder %v343, 1
    %vm363 = vcmp.lt.s32.totalorder %v343, 2
    %vm364 = vcmp.lt.s32.totalorder %v343, 3
    %vm365 = vcmp.lt.s32.totalorder %v343, 4
    %v366 = vsel %vm362, %v346, %v349
    %v367 = vsel %vm365, %v355, 2102212464
    %v368 = vsel %vm364, %v352, %v367
    %v369 = vsel %vm363, %v366, %v368
    %v370 = vsel %vm362, %v349, %v352
    %v371 = vsel %vm365, %v358, 920167782
    %v372 = vsel %vm364, %v355, %v371
    %v373 = vsel %vm363, %v370, %v372
    %v374 = vsel %vm362, %v352, %v355
    %v375 = vsel %vm365, %v361, 1326507024
    %v376 = vsel %vm364, %v358, %v375
    %v377 = vsel %vm363, %v374, %v376
    %v378 = vshll.u32 %v338, 8
    %v379 = vmul.u32.u64.compose %v378, %v377
    %v380 = vextract.low.u32 %v379
    %v381 = vextract.high.u32 %v379
    %v382 = vmul.u32.u64.compose %v378, %v373
    %v383 = vextract.low.u32 %v382
    %v384 = vextract.high.u32 %v382
    %v385 = vmul.u32 %v378, %v369
    %v386 = vadd.s32 %v381, %v383
    %vm387 = vc.u32 %v381, %v383
    %v388 = vadd.s32 %v384, 1
    %v389 = vsel %vm387, %v388, %v384
    %v390 = vadd.s32 %v385, %v389
    %v391 = vadd.s32 %v390, 536870912
    %v392 = vshrl.u32 %v391, 30
    %v393 = vshll.u32 %v392, 30
    %v394 = vsub.s32 %v390, %v393
    %vm395 = vcmp.lt.s32.totalorder %v394, 0
    %v396 = vsub.s32 0, %v394
    %v397 = vsel %vm395, %v396, %v394
    %v398 = vclz %v397
    %v399 = vsub.s32 %v398, 2
    %vm400 = vcmp.gt.s32.totalorder 0, %v399
    %v401 = vsel %vm400, 0, %v399
    %v402 = vsub.s32 32, %v401
    %v403 = vshll.u32 %v394, %v401
    %v404 = vshrl.u32 %v386, %v402
    %v405 = vor.u32 %v403, %v404
    %v406 = vsub.s32 4294967266, %v401
    %v407 = vadd.s32 %v406, 127
    %v408 = vshll.u32 %v407, 23
    %v409 = vor.u32 4788187, %v408
    %v410 = vand.u32 2147483647, %v409
    %v412 = vcvt.s32.f32 %v405
    %v413 = vmul.f32 %v412, %v410
    %v414 = vxor.u32 %v413, 2147483648
    %v415 = vsel %vm332, %v414, %v413
    %v416 = vsub.s32 4, %v392
    %v417 = vsel %vm332, %v416, %v392
    %v418 = vsel %vm331, %v114, %v415
    %v419 = vsel %vm331, 0, %v417
    %v420 = vcosq.f32.pop %v418
    %v421 = vsinq.f32.pop %v418
    %vm422 = vweird.f32 %v114
    %v423 = vand.u32 %v419, 3
    %vm424 = vcmp.lt.s32.totalorder %v423, 2
    %vm425 = vcmp.eq.s32.totalorder %v423, 0
    %v426 = vxor.u32 %v421, 2147483648
    %v427 = vsel %vm425, %v420, %v426
    %vm428 = vcmp.eq.s32.totalorder %v423, 2
    %v429 = vxor.u32 %v420, 2147483648
    %v430 = vsel %vm428, %v429, %v421
    %v431 = vsel %vm424, %v427, %v430
    %v432 = vsel %vm422, nan, %v431
    %v433 = vand.u32 2147483647, %v119
    %vm434 = vcmp.le.f32.partialorder %v433, 0.7853982
    %vm435 = vcmp.lt.s32.totalorder %v119, 0
    %v436 = vand.u32 %v119, 2139095040
    %v437 = vshrl.u32 %v436, 23
    %v438 = vsub.s32 %v437, 127
    %v439 = vand.u32 2147483647, %v119
    %v440 = vand.u32 %v439, 8388607
    %v441 = vor.u32 %v440, 8388608
    %v442 = vsub.s32 0, %v441
    %v443 = vadd.s32 %v438, 1
    %vm444 = vcmp.gt.s32.totalorder %v443, 0
    %v445 = vsel %vm444, %v443, 0
    %v446 = vshrl.u32 %v445, 5
    %v447 = vand.u32 %v445, 31
    %v448 = vsub.s32 32, %v447
    %v449 = vshrl.u32 683565275, %v448
    %v450 = vshll.u32 683565275, %v447
    %v451 = vshrl.u32 2475754826, %v448
    %v452 = vor.u32 %v450, %v451
    %v453 = vshll.u32 2475754826, %v447
    %v454 = vshrl.u32 2131351028, %v448
    %v455 = vor.u32 %v453, %v454
    %v456 = vshll.u32 2131351028, %v447
    %v457 = vshrl.u32 2102212464, %v448
    %v458 = vor.u32 %v456, %v457
    %v459 = vshll.u32 2102212464, %v447
    %v460 = vshrl.u32 920167782, %v448
    %v461 = vor.u32 %v459, %v460
    %v462 = vshll.u32 920167782, %v447
    %v463 = vshrl.u32 1326507024, %v448
    %v464 = vor.u32 %v462, %v463
    %vm465 = vcmp.lt.s32.totalorder %v446, 1
    %vm466 = vcmp.lt.s32.totalorder %v446, 2
    %vm467 = vcmp.lt.s32.totalorder %v446, 3
    %vm468 = vcmp.lt.s32.totalorder %v446, 4
    %v469 = vsel %vm465, %v449, %v452
    %v470 = vsel %vm468, %v458, 2102212464
    %v471 = vsel %vm467, %v455, %v470
    %v472 = vsel %vm466, %v469, %v471
    %v473 = vsel %vm465, %v452, %v455
    %v474 = vsel %vm468, %v461, 920167782
    %v475 = vsel %vm467, %v458, %v474
    %v476 = vsel %vm466, %v473, %v475
    %v477 = vsel %vm465, %v455, %v458
    %v478 = vsel %vm468, %v464, 1326507024
    %v479 = vsel %vm467, %v461, %v478
    %v480 = vsel %vm466, %v477, %v479
    %v481 = vshll.u32 %v441, 8
    %v482 = vmul.u32.u64.compose %v481, %v480
    %v483 = vextract.low.u32 %v482
    %v484 = vextract.high.u32 %v482
    %v485 = vmul.u32.u64.compose %v481, %v476
    %v486 = vextract.low.u32 %v485
    %v487 = vextract.high.u32 %v485
    %v488 = vmul.u32 %v481, %v472
    %v489 = vadd.s32 %v484, %v486
    %vm490 = vc.u32 %v484, %v486
    %v491 = vadd.s32 %v487, 1
    %v492 = vsel %vm490, %v491, %v487
    %v493 = vadd.s32 %v488, %v492
    %v494 = vadd.s32 %v493, 536870912
    %v495 = vshrl.u32 %v494, 30
    %v496 = vshll.u32 %v495, 30
    %v497 = vsub.s32 %v493, %v496
    %vm498 = vcmp.lt.s32.totalorder %v497, 0
    %v499 = vsub.s32 0, %v497
    %v500 = vsel %vm498, %v499, %v497
    %v501 = vclz %v500
    %v502 = vsub.s32 %v501, 2
    %vm503 = vcmp.gt.s32.totalorder 0, %v502
    %v504 = vsel %vm503, 0, %v502
    %v505 = vsub.s32 32, %v504
    %v506 = vshll.u32 %v497, %v504
    %v507 = vshrl.u32 %v489, %v505
    %v508 = vor.u32 %v506, %v507
    %v509 = vsub.s32 4294967266, %v504
    %v510 = vadd.s32 %v509, 127
    %v511 = vshll.u32 %v510, 23
    %v512 = vor.u32 4788187, %v511
    %v513 = vand.u32 2147483647, %v512
    %v515 = vcvt.s32.f32 %v508
    %v516 = vmul.f32 %v515, %v513
    %v517 = vxor.u32 %v516, 2147483648
    %v518 = vsel %vm435, %v517, %v516
    %v519 = vsub.s32 4, %v495
    %v520 = vsel %vm435, %v519, %v495
    %v521 = vsel %vm434, %v119, %v518
    %v522 = vsel %vm434, 0, %v520
    %v523 = vcosq.f32.pop %v521
    %v524 = vsinq.f32.pop %v521
    %vm525 = vweird.f32 %v119
    %v526 = vand.u32 %v522, 3
    %vm527 = vcmp.lt.s32.totalorder %v526, 2
    %vm528 = vcmp.eq.s32.totalorder %v526, 0
    %v529 = vxor.u32 %v524, 2147483648
    %v530 = vsel %vm528, %v523, %v529
    %vm531 = vcmp.eq.s32.totalorder %v526, 2
    %v532 = vxor.u32 %v523, 2147483648
    %v533 = vsel %vm531, %v532, %v524
    %v534 = vsel %vm527, %v530, %v533
    %v535 = vsel %vm525, nan, %v534
    %v536 = vld [vmem:[%s2] sm:$0xff]
    %v537 = vld [vmem:[%s2 + $0x8] sm:$0xff]
    %v538 = vld [vmem:[%s2 + $0x10] sm:$0xff]
    %v539 = vld [vmem:[%s2 + $0x18] sm:$0xff]
    %v540 = vld [vmem:[%s3] sm:$0xff]
    %v541 = vld [vmem:[%s3 + $0x8] sm:$0xff]
    %v542 = vld [vmem:[%s3 + $0x10] sm:$0xff]
    %v543 = vld [vmem:[%s3 + $0x18] sm:$0xff]
    %v545 = vsel %vm40, %v540, 0
    %v548 = vsel %vm40, %v541, 0
    %v551 = vsel %vm40, %v542, 0
    %v554 = vsel %vm40, %v543, 0
    %556 = vmatprep.subr.mxu0 0.0
    %557 = vmatpush1.msra.mxu0 %v225
    %558 = vmatprep.subr.mxu0 0.0
    %559 = vmatpush1.msra.mxu0 %v329
    %560 = vmatprep.subr.mxu0 0.0
    %561 = vmatpush1.msra.mxu0 0.0
    %562 = vmatprep.subr.mxu0 0.0
    %563 = vmatpush1.msra.mxu0 0.0
    %564 = vmatprep.subr.mxu0 0.0
    %565 = vmatpush1.msra.mxu0 0.0
    %566 = vmatprep.subr.mxu0 0.0
    %567 = vmatpush1.msra.mxu0 0.0
    %568 = vmatprep.subr.mxu0 0.0
    %569 = vmatpush1.msra.mxu0 0.0
    %570 = vmatprep.subr.mxu0 0.0
    %571 = vmatpush1.msra.mxu0 0.0
    %572 = vmatprep.subr.mxu0 0.0
    %573 = vmatpush1.msra.mxu0 0.0
    %574 = vmatprep.subr.mxu0 0.0
    %575 = vmatpush1.msra.mxu0 0.0
    %576 = vmatprep.subr.mxu0 0.0
    %577 = vmatpush1.msra.mxu0 0.0
    %578 = vmatprep.subr.mxu0 0.0
    %579 = vmatpush1.msra.mxu0 0.0
    %580 = vmatprep.subr.mxu0 0.0
    %581 = vmatpush1.msra.mxu0 0.0
    %582 = vmatprep.subr.mxu0 0.0
    %583 = vmatpush1.msra.mxu0 0.0
    %584 = vmatprep.subr.mxu0 0.0
    %585 = vmatpush1.msra.mxu0 0.0
    %586 = vmatprep.subr.mxu0 0.0
    %587 = vmatpush1.msra.mxu0 0.0
    %588 = vmatprep.subr.mxu0 0.0
    %589 = vmatpush1.msra.mxu0 0.0
    %590 = vmatprep.subr.mxu0 0.0
    %591 = vmatpush1.msra.mxu0 0.0
    %592 = vmatprep.subr.mxu0 0.0
    %593 = vmatpush1.msra.mxu0 0.0
    %594 = vmatprep.subr.mxu0 0.0
    %595 = vmatpush1.msra.mxu0 0.0
    %596 = vmatprep.subr.mxu0 0.0
    %597 = vmatpush1.msra.mxu0 0.0
    %598 = vmatprep.subr.mxu0 0.0
    %599 = vmatpush1.msra.mxu0 0.0
    %600 = vmatprep.subr.mxu0 0.0
    %601 = vmatpush1.msra.mxu0 0.0
    %602 = vmatprep.subr.mxu0 0.0
    %603 = vmatpush1.msra.mxu0 0.0
    %604 = vmatprep.subr.mxu0 0.0
    %605 = vmatpush1.msra.mxu0 0.0
    %606 = vmatprep.subr.mxu0 0.0
    %607 = vmatpush1.msra.mxu0 0.0
    %608 = vmatprep.subr.mxu0 0.0
    %609 = vmatpush1.msra.mxu0 0.0
    %610 = vmatprep.subr.mxu0 0.0
    %611 = vmatpush1.msra.mxu0 0.0
    %612 = vmatprep.subr.mxu0 0.0
    %613 = vmatpush1.msra.mxu0 0.0
    %614 = vmatprep.subr.mxu0 0.0
    %615 = vmatpush1.msra.mxu0 0.0
    %616 = vmatprep.subr.mxu0 0.0
    %617 = vmatpush1.msra.mxu0 0.0
    %618 = vmatprep.subr.mxu0 0.0
    %619 = vmatpush1.msra.mxu0 0.0
    %620 = vmatprep.mubr.f32.mxu0 0.0
    %621 = vmatmul.mubr.f32.gmra.mrb[0].mxu0 %v545
    %v622 = vpop.f32.mrb[0].mxu0
    %v623 = vadd.f32 0.0, %v622
    %v624 = vpop.f32.mrb[0].mxu0
    %625 = vmatprep.mubr.f32.mxu0 0.0
    %626 = vmatmul.mubr.f32.gmra.mrb[0].mxu0 %v548
    %v627 = vpop.f32.mrb[0].mxu0
    %v628 = vadd.f32 0.0, %v627
    %v629 = vpop.f32.mrb[0].mxu0
    %630 = vmatprep.mubr.f32.mxu0 0.0
    %631 = vmatmul.mubr.f32.gmra.mrb[0].mxu0 %v551
    %v632 = vpop.f32.mrb[0].mxu0
    %v633 = vadd.f32 0.0, %v632
    %v634 = vpop.f32.mrb[0].mxu0
    %635 = vmatprep.mubr.f32.mxu0 0.0
    %636 = vmatmul.mubr.f32.gmra.mrb[0].mxu0 %v554
    %v637 = vpop.f32.mrb[0].mxu0
    %v638 = vadd.f32 0.0, %v637
    %v639 = vpop.f32.mrb[0].mxu0
    %640 = vdwg.mxu0
    %v642 = vsel %vm40, %v536, 0
    %v645 = vsel %vm40, %v537, 0
    %v648 = vsel %vm40, %v538, 0
    %v651 = vsel %vm40, %v539, 0
    %653 = vmatprep.subr.mxu0 0.0
    %654 = vmatpush1.msra.mxu0 %v36
    %655 = vmatprep.subr.mxu0 0.0
    %656 = vmatpush1.msra.mxu0 %v37
    %657 = vmatprep.subr.mxu0 0.0
    %658 = vmatpush1.msra.mxu0 0.0
    %659 = vmatprep.subr.mxu0 0.0
    %660 = vmatpush1.msra.mxu0 0.0
    %661 = vmatprep.subr.mxu0 0.0
    %662 = vmatpush1.msra.mxu0 0.0
    %663 = vmatprep.subr.mxu0 0.0
    %664 = vmatpush1.msra.mxu0 0.0
    %665 = vmatprep.subr.mxu0 0.0
    %666 = vmatpush1.msra.mxu0 0.0
    %667 = vmatprep.subr.mxu0 0.0
    %668 = vmatpush1.msra.mxu0 0.0
    %669 = vmatprep.subr.mxu0 0.0
    %670 = vmatpush1.msra.mxu0 0.0
    %671 = vmatprep.subr.mxu0 0.0
    %672 = vmatpush1.msra.mxu0 0.0
    %673 = vmatprep.subr.mxu0 0.0
    %674 = vmatpush1.msra.mxu0 0.0
    %675 = vmatprep.subr.mxu0 0.0
    %676 = vmatpush1.msra.mxu0 0.0
    %677 = vmatprep.subr.mxu0 0.0
    %678 = vmatpush1.msra.mxu0 0.0
    %679 = vmatprep.subr.mxu0 0.0
    %680 = vmatpush1.msra.mxu0 0.0
    %681 = vmatprep.subr.mxu0 0.0
    %682 = vmatpush1.msra.mxu0 0.0
    %683 = vmatprep.subr.mxu0 0.0
    %684 = vmatpush1.msra.mxu0 0.0
    %685 = vmatprep.subr.mxu0 0.0
    %686 = vmatpush1.msra.mxu0 0.0
    %687 = vmatprep.subr.mxu0 0.0
    %688 = vmatpush1.msra.mxu0 0.0
    %689 = vmatprep.subr.mxu0 0.0
    %690 = vmatpush1.msra.mxu0 0.0
    %691 = vmatprep.subr.mxu0 0.0
    %692 = vmatpush1.msra.mxu0 0.0
    %693 = vmatprep.subr.mxu0 0.0
    %694 = vmatpush1.msra.mxu0 0.0
    %695 = vmatprep.subr.mxu0 0.0
    %696 = vmatpush1.msra.mxu0 0.0
    %697 = vmatprep.subr.mxu0 0.0
    %698 = vmatpush1.msra.mxu0 0.0
    %699 = vmatprep.subr.mxu0 0.0
    %700 = vmatpush1.msra.mxu0 0.0
    %701 = vmatprep.subr.mxu0 0.0
    %702 = vmatpush1.msra.mxu0 0.0
    %703 = vmatprep.subr.mxu0 0.0
    %704 = vmatpush1.msra.mxu0 0.0
    %705 = vmatprep.subr.mxu0 0.0
    %706 = vmatpush1.msra.mxu0 0.0
    %707 = vmatprep.subr.mxu0 0.0
    %708 = vmatpush1.msra.mxu0 0.0
    %709 = vmatprep.subr.mxu0 0.0
    %710 = vmatpush1.msra.mxu0 0.0
    %711 = vmatprep.subr.mxu0 0.0
    %712 = vmatpush1.msra.mxu0 0.0
    %713 = vmatprep.subr.mxu0 0.0
    %714 = vmatpush1.msra.mxu0 0.0
    %715 = vmatprep.subr.mxu0 0.0
    %716 = vmatpush1.msra.mxu0 0.0
    %717 = vmatprep.mubr.f32.mxu0 0.0
    %718 = vmatmul.mubr.f32.gmra.mrb[0].mxu0 %v642
    %v719 = vpop.f32.mrb[0].mxu0
    %v720 = vadd.f32 %v623, %v719
    %v721 = vpop.f32.mrb[0].mxu0
    %722 = vmatprep.mubr.f32.mxu0 0.0
    %723 = vmatmul.mubr.f32.gmra.mrb[0].mxu0 %v645
    %v724 = vpop.f32.mrb[0].mxu0
    %v725 = vadd.f32 %v628, %v724
    %v726 = vpop.f32.mrb[0].mxu0
    %727 = vmatprep.mubr.f32.mxu0 0.0
    %728 = vmatmul.mubr.f32.gmra.mrb[0].mxu0 %v648
    %v729 = vpop.f32.mrb[0].mxu0
    %v730 = vadd.f32 %v633, %v729
    %v731 = vpop.f32.mrb[0].mxu0
    %732 = vmatprep.mubr.f32.mxu0 0.0
    %733 = vmatmul.mubr.f32.gmra.mrb[0].mxu0 %v651
    %v734 = vpop.f32.mrb[0].mxu0
    %v735 = vadd.f32 %v638, %v734
    %v736 = vpop.f32.mrb[0].mxu0
    %737 = vdwg.mxu0
    %v738 = vld [vmem:[%s4] sm:$0xff]
    %v739 = vld [vmem:[%s4 + $0x8] sm:$0xff]
    %v740 = vld [vmem:[%s4 + $0x10] sm:$0xff]
    %v741 = vld [vmem:[%s4 + $0x18] sm:$0xff]
    %v743 = vsel %vm40, %v738, 0
    %v746 = vsel %vm40, %v739, 0
    %v749 = vsel %vm40, %v740, 0
    %v752 = vsel %vm40, %v741, 0
    %754 = vmatprep.subr.mxu0 0.0
    %755 = vmatpush1.msra.mxu0 %v432
    %756 = vmatprep.subr.mxu0 0.0
    %757 = vmatpush1.msra.mxu0 %v535
    %758 = vmatprep.subr.mxu0 0.0
    %759 = vmatpush1.msra.mxu0 0.0
    %760 = vmatprep.subr.mxu0 0.0
    %761 = vmatpush1.msra.mxu0 0.0
    %762 = vmatprep.subr.mxu0 0.0
    %763 = vmatpush1.msra.mxu0 0.0
    %764 = vmatprep.subr.mxu0 0.0
    %765 = vmatpush1.msra.mxu0 0.0
    %766 = vmatprep.subr.mxu0 0.0
    %767 = vmatpush1.msra.mxu0 0.0
    %768 = vmatprep.subr.mxu0 0.0
    %769 = vmatpush1.msra.mxu0 0.0
    %770 = vmatprep.subr.mxu0 0.0
    %771 = vmatpush1.msra.mxu0 0.0
    %772 = vmatprep.subr.mxu0 0.0
    %773 = vmatpush1.msra.mxu0 0.0
    %774 = vmatprep.subr.mxu0 0.0
    %775 = vmatpush1.msra.mxu0 0.0
    %776 = vmatprep.subr.mxu0 0.0
    %777 = vmatpush1.msra.mxu0 0.0
    %778 = vmatprep.subr.mxu0 0.0
    %779 = vmatpush1.msra.mxu0 0.0
    %780 = vmatprep.subr.mxu0 0.0
    %781 = vmatpush1.msra.mxu0 0.0
    %782 = vmatprep.subr.mxu0 0.0
    %783 = vmatpush1.msra.mxu0 0.0
    %784 = vmatprep.subr.mxu0 0.0
    %785 = vmatpush1.msra.mxu0 0.0
    %786 = vmatprep.subr.mxu0 0.0
    %787 = vmatpush1.msra.mxu0 0.0
    %788 = vmatprep.subr.mxu0 0.0
    %789 = vmatpush1.msra.mxu0 0.0
    %790 = vmatprep.subr.mxu0 0.0
    %791 = vmatpush1.msra.mxu0 0.0
    %792 = vmatprep.subr.mxu0 0.0
    %793 = vmatpush1.msra.mxu0 0.0
    %794 = vmatprep.subr.mxu0 0.0
    %795 = vmatpush1.msra.mxu0 0.0
    %796 = vmatprep.subr.mxu0 0.0
    %797 = vmatpush1.msra.mxu0 0.0
    %798 = vmatprep.subr.mxu0 0.0
    %799 = vmatpush1.msra.mxu0 0.0
    %800 = vmatprep.subr.mxu0 0.0
    %801 = vmatpush1.msra.mxu0 0.0
    %802 = vmatprep.subr.mxu0 0.0
    %803 = vmatpush1.msra.mxu0 0.0
    %804 = vmatprep.subr.mxu0 0.0
    %805 = vmatpush1.msra.mxu0 0.0
    %806 = vmatprep.subr.mxu0 0.0
    %807 = vmatpush1.msra.mxu0 0.0
    %808 = vmatprep.subr.mxu0 0.0
    %809 = vmatpush1.msra.mxu0 0.0
    %810 = vmatprep.subr.mxu0 0.0
    %811 = vmatpush1.msra.mxu0 0.0
    %812 = vmatprep.subr.mxu0 0.0
    %813 = vmatpush1.msra.mxu0 0.0
    %814 = vmatprep.subr.mxu0 0.0
    %815 = vmatpush1.msra.mxu0 0.0
    %816 = vmatprep.subr.mxu0 0.0
    %817 = vmatpush1.msra.mxu0 0.0
    %818 = vmatprep.mubr.f32.mxu0 0.0
    %819 = vmatmul.mubr.f32.gmra.mrb[0].mxu0 %v743
    %v820 = vpop.f32.mrb[0].mxu0
    %v821 = vadd.f32 0.0, %v820
    %v822 = vpop.f32.mrb[0].mxu0
    %823 = vmatprep.mubr.f32.mxu0 0.0
    %824 = vmatmul.mubr.f32.gmra.mrb[0].mxu0 %v746
    %v825 = vpop.f32.mrb[0].mxu0
    %v826 = vadd.f32 0.0, %v825
    %v827 = vpop.f32.mrb[0].mxu0
    %828 = vmatprep.mubr.f32.mxu0 0.0
    %829 = vmatmul.mubr.f32.gmra.mrb[0].mxu0 %v749
    %v830 = vpop.f32.mrb[0].mxu0
    %v831 = vadd.f32 0.0, %v830
    %v832 = vpop.f32.mrb[0].mxu0
    %833 = vmatprep.mubr.f32.mxu0 0.0
    %834 = vmatmul.mubr.f32.gmra.mrb[0].mxu0 %v752
    %v835 = vpop.f32.mrb[0].mxu0
    %v836 = vadd.f32 0.0, %v835
    %v837 = vpop.f32.mrb[0].mxu0
    %838 = vdwg.mxu0
    %v839 = vadd.f32 %v720, %v821
    %v840 = vadd.f32 %v725, %v826
    %v841 = vadd.f32 %v730, %v831
    %v842 = vadd.f32 %v735, %v836
    %v843 = vld [vmem:[%s5] sm:$0xff]
    %v844 = vld [vmem:[%s5 + $0x8] sm:$0xff]
    %v845 = vld [vmem:[%s5 + $0x10] sm:$0xff]
    %v846 = vld [vmem:[%s5 + $0x18] sm:$0xff]
    %848 = vset.pattern.permute.xlu0 0
    %849 = vperm.xlu0 %848, %v843
    %v850 = vpop.permute.xlu0 %849
    %853 = vset.pattern.permute.xlu0 0
    %854 = vperm.xlu0 %853, %v844
    %v855 = vpop.permute.xlu0 %854
    %858 = vset.pattern.permute.xlu0 0
    %859 = vperm.xlu0 %858, %v845
    %v860 = vpop.permute.xlu0 %859
    %863 = vset.pattern.permute.xlu0 0
    %864 = vperm.xlu0 %863, %v846
    %v865 = vpop.permute.xlu0 %864
    %v867 = vadd.f32 %v839, %v850
    %v868 = vadd.f32 %v840, %v855
    %v869 = vadd.f32 %v841, %v860
    %v870 = vadd.f32 %v842, %v865
    %v871 = vmax.f32 %v867, 0.0
    %v872 = vmax.f32 %v868, 0.0
    %v873 = vmax.f32 %v869, 0.0
    %v874 = vmax.f32 %v870, 0.0
    %v875 = vld [vmem:[%s6] sm:$0xff]
    %v876 = vld [vmem:[%s6 + $0x8] sm:$0xff]
    %v877 = vld [vmem:[%s6 + $0x10] sm:$0xff]
    %v878 = vld [vmem:[%s6 + $0x18] sm:$0xff]
    %v879 = vld [vmem:[%s7] sm:$0xff]
    %v880 = vld [vmem:[%s7 + $0x8] sm:$0xff]
    %v881 = vld [vmem:[%s7 + $0x10] sm:$0xff]
    %v882 = vld [vmem:[%s7 + $0x18] sm:$0xff]
    %884 = vset.pattern.permute.xlu0 0
    %885 = vperm.xlu0 %884, %v879
    %v886 = vpop.permute.xlu0 %885
    %889 = vset.pattern.permute.xlu0 0
    %890 = vperm.xlu0 %889, %v880
    %v891 = vpop.permute.xlu0 %890
    %894 = vset.pattern.permute.xlu0 0
    %895 = vperm.xlu0 %894, %v881
    %v896 = vpop.permute.xlu0 %895
    %899 = vset.pattern.permute.xlu0 0
    %900 = vperm.xlu0 %899, %v882
    %v901 = vpop.permute.xlu0 %900
    %vm903 = vcmask 261120
    %v905 = vsel %vm903, %v875, 0
    %v908 = vsel %vm903, %v876, 0
    %v911 = vsel %vm903, %v877, 0
    %v914 = vsel %vm903, %v878, 0
    %916 = vmatprep.subr.mxu0 0.0
    %917 = vmatpush1.msra.mxu0 %v871
    %918 = vmatprep.subr.mxu0 0.0
    %919 = vmatpush1.msra.mxu0 %v872
    %920 = vmatprep.subr.mxu0 0.0
    %921 = vmatpush1.msra.mxu0 %v873
    %922 = vmatprep.subr.mxu0 0.0
    %923 = vmatpush1.msra.mxu0 %v874
    %924 = vmatprep.subr.mxu0 0.0
    %925 = vmatpush1.msra.mxu0 0.0
    %926 = vmatprep.subr.mxu0 0.0
    %927 = vmatpush1.msra.mxu0 0.0
    %928 = vmatprep.subr.mxu0 0.0
    %929 = vmatpush1.msra.mxu0 0.0
    %930 = vmatprep.subr.mxu0 0.0
    %931 = vmatpush1.msra.mxu0 0.0
    %932 = vmatprep.subr.mxu0 0.0
    %933 = vmatpush1.msra.mxu0 0.0
    %934 = vmatprep.subr.mxu0 0.0
    %935 = vmatpush1.msra.mxu0 0.0
    %936 = vmatprep.subr.mxu0 0.0
    %937 = vmatpush1.msra.mxu0 0.0
    %938 = vmatprep.subr.mxu0 0.0
    %939 = vmatpush1.msra.mxu0 0.0
    %940 = vmatprep.subr.mxu0 0.0
    %941 = vmatpush1.msra.mxu0 0.0
    %942 = vmatprep.subr.mxu0 0.0
    %943 = vmatpush1.msra.mxu0 0.0
    %944 = vmatprep.subr.mxu0 0.0
    %945 = vmatpush1.msra.mxu0 0.0
    %946 = vmatprep.subr.mxu0 0.0
    %947 = vmatpush1.msra.mxu0 0.0
    %948 = vmatprep.subr.mxu0 0.0
    %949 = vmatpush1.msra.mxu0 0.0
    %950 = vmatprep.subr.mxu0 0.0
    %951 = vmatpush1.msra.mxu0 0.0
    %952 = vmatprep.subr.mxu0 0.0
    %953 = vmatpush1.msra.mxu0 0.0
    %954 = vmatprep.subr.mxu0 0.0
    %955 = vmatpush1.msra.mxu0 0.0
    %956 = vmatprep.subr.mxu0 0.0
    %957 = vmatpush1.msra.mxu0 0.0
    %958 = vmatprep.subr.mxu0 0.0
    %959 = vmatpush1.msra.mxu0 0.0
    %960 = vmatprep.subr.mxu0 0.0
    %961 = vmatpush1.msra.mxu0 0.0
    %962 = vmatprep.subr.mxu0 0.0
    %963 = vmatpush1.msra.mxu0 0.0
    %964 = vmatprep.subr.mxu0 0.0
    %965 = vmatpush1.msra.mxu0 0.0
    %966 = vmatprep.subr.mxu0 0.0
    %967 = vmatpush1.msra.mxu0 0.0
    %968 = vmatprep.subr.mxu0 0.0
    %969 = vmatpush1.msra.mxu0 0.0
    %970 = vmatprep.subr.mxu0 0.0
    %971 = vmatpush1.msra.mxu0 0.0
    %972 = vmatprep.subr.mxu0 0.0
    %973 = vmatpush1.msra.mxu0 0.0
    %974 = vmatprep.subr.mxu0 0.0
    %975 = vmatpush1.msra.mxu0 0.0
    %976 = vmatprep.subr.mxu0 0.0
    %977 = vmatpush1.msra.mxu0 0.0
    %978 = vmatprep.subr.mxu0 0.0
    %979 = vmatpush1.msra.mxu0 0.0
    %980 = vmatprep.mubr.f32.mxu0 0.0
    %981 = vmatmul.mubr.f32.gmra.mrb[0].mxu0 %v905
    %v982 = vpop.f32.mrb[0].mxu0
    %v983 = vadd.f32 %v886, %v982
    %v984 = vpop.f32.mrb[0].mxu0
    %985 = vmatprep.mubr.f32.mxu0 0.0
    %986 = vmatmul.mubr.f32.gmra.mrb[0].mxu0 %v908
    %v987 = vpop.f32.mrb[0].mxu0
    %v988 = vadd.f32 %v891, %v987
    %v989 = vpop.f32.mrb[0].mxu0
    %990 = vmatprep.mubr.f32.mxu0 0.0
    %991 = vmatmul.mubr.f32.gmra.mrb[0].mxu0 %v911
    %v992 = vpop.f32.mrb[0].mxu0
    %v993 = vadd.f32 %v896, %v992
    %v994 = vpop.f32.mrb[0].mxu0
    %995 = vmatprep.mubr.f32.mxu0 0.0
    %996 = vmatmul.mubr.f32.gmra.mrb[0].mxu0 %v914
    %v997 = vpop.f32.mrb[0].mxu0
    %v998 = vadd.f32 %v901, %v997
    %v999 = vpop.f32.mrb[0].mxu0
    %1000 = vdwg.mxu0
    %v1001 = vmax.f32 %v983, 0.0
    %v1002 = vmax.f32 %v988, 0.0
    %v1003 = vmax.f32 %v993, 0.0
    %v1004 = vmax.f32 %v998, 0.0
    %v1005 = vld [vmem:[%s8] sm:$0xf]
    %v1006 = vld [vmem:[%s9] sm:$0xf]
    %1008 = vset.pattern.permute.xlu0 0
    %1009 = vperm.xlu0 %1008, %v1006
    %v1010 = vpop.permute.xlu0 %1009
    %v1013 = vsel %vm903, %v1005, 0
    %1015 = vmatprep.subr.mxu0 0.0
    %1016 = vmatpush1.msra.mxu0 %v1001
    %1017 = vmatprep.subr.mxu0 0.0
    %1018 = vmatpush1.msra.mxu0 %v1002
    %1019 = vmatprep.subr.mxu0 0.0
    %1020 = vmatpush1.msra.mxu0 %v1003
    %1021 = vmatprep.subr.mxu0 0.0
    %1022 = vmatpush1.msra.mxu0 %v1004
    %1023 = vmatprep.subr.mxu0 0.0
    %1024 = vmatpush1.msra.mxu0 0.0
    %1025 = vmatprep.subr.mxu0 0.0
    %1026 = vmatpush1.msra.mxu0 0.0
    %1027 = vmatprep.subr.mxu0 0.0
    %1028 = vmatpush1.msra.mxu0 0.0
    %1029 = vmatprep.subr.mxu0 0.0
    %1030 = vmatpush1.msra.mxu0 0.0
    %1031 = vmatprep.subr.mxu0 0.0
    %1032 = vmatpush1.msra.mxu0 0.0
    %1033 = vmatprep.subr.mxu0 0.0
    %1034 = vmatpush1.msra.mxu0 0.0
    %1035 = vmatprep.subr.mxu0 0.0
    %1036 = vmatpush1.msra.mxu0 0.0
    %1037 = vmatprep.subr.mxu0 0.0
    %1038 = vmatpush1.msra.mxu0 0.0
    %1039 = vmatprep.subr.mxu0 0.0
    %1040 = vmatpush1.msra.mxu0 0.0
    %1041 = vmatprep.subr.mxu0 0.0
    %1042 = vmatpush1.msra.mxu0 0.0
    %1043 = vmatprep.subr.mxu0 0.0
    %1044 = vmatpush1.msra.mxu0 0.0
    %1045 = vmatprep.subr.mxu0 0.0
    %1046 = vmatpush1.msra.mxu0 0.0
    %1047 = vmatprep.subr.mxu0 0.0
    %1048 = vmatpush1.msra.mxu0 0.0
    %1049 = vmatprep.subr.mxu0 0.0
    %1050 = vmatpush1.msra.mxu0 0.0
    %1051 = vmatprep.subr.mxu0 0.0
    %1052 = vmatpush1.msra.mxu0 0.0
    %1053 = vmatprep.subr.mxu0 0.0
    %1054 = vmatpush1.msra.mxu0 0.0
    %1055 = vmatprep.subr.mxu0 0.0
    %1056 = vmatpush1.msra.mxu0 0.0
    %1057 = vmatprep.subr.mxu0 0.0
    %1058 = vmatpush1.msra.mxu0 0.0
    %1059 = vmatprep.subr.mxu0 0.0
    %1060 = vmatpush1.msra.mxu0 0.0
    %1061 = vmatprep.subr.mxu0 0.0
    %1062 = vmatpush1.msra.mxu0 0.0
    %1063 = vmatprep.subr.mxu0 0.0
    %1064 = vmatpush1.msra.mxu0 0.0
    %1065 = vmatprep.subr.mxu0 0.0
    %1066 = vmatpush1.msra.mxu0 0.0
    %1067 = vmatprep.subr.mxu0 0.0
    %1068 = vmatpush1.msra.mxu0 0.0
    %1069 = vmatprep.subr.mxu0 0.0
    %1070 = vmatpush1.msra.mxu0 0.0
    %1071 = vmatprep.subr.mxu0 0.0
    %1072 = vmatpush1.msra.mxu0 0.0
    %1073 = vmatprep.subr.mxu0 0.0
    %1074 = vmatpush1.msra.mxu0 0.0
    %1075 = vmatprep.subr.mxu0 0.0
    %1076 = vmatpush1.msra.mxu0 0.0
    %1077 = vmatprep.subr.mxu0 0.0
    %1078 = vmatpush1.msra.mxu0 0.0
    %1079 = vmatprep.mubr.f32.mxu0 0.0
    %1080 = vmatmul.mubr.f32.gmra.mrb[0].mxu0 %v1013
    %v1081 = vpop.f32.mrb[0].mxu0
    %v1082 = vadd.f32 %v1010, %v1081
    %v1083 = vpop.f32.mrb[0].mxu0
    %1084 = vdwg.mxu0
    %1085 = vst [vmem:[#allocation2] sm:$0xf] %v1082
    // Predicated region
    $region42: #{_pallas_forward.1} parent=1 // pred_check
      _
    $region43: #{_pallas_forward.1} parent=1 // pred_check_branch
      %1087 = sbr.rel (0) target = $region45
    $region44: #{_pallas_forward.1} parent=1 // pred_region
      %s1089 = ssub.s32 64, 64
      %1090 = vsyncadd [#allocation3], %s1089
      %s1092 = sshll.u32 [#allocation2], 4
      %s1093 = int_to_ptr.vmem [resolvable:$true] %s1092
      %1095 = dma.vmem_to_hbm [thread:$0]  %s1093, 64, %s10, [#allocation3]
    $region45: #{_pallas_forward.1} parent=1 // pred_fallthru
      _
    // Predicated region
    $region46: #{_pallas_forward.1} parent=1 // pred_check
      _
    $region47: #{_pallas_forward.1} parent=1 // pred_check_branch
      %1097 = sbr.rel (0) target = $region49
    $region48: #{_pallas_forward.1} parent=1 // pred_region
      %1098 = dma.done [#allocation3], 64
    $region49: #{_pallas_forward.1} parent=1 // pred_fallthru
      _
    %1099 = vsyncpa [#allocation3], 1

</llo_original>
